<compile_context>
chip_gen: v7x
topology: tpu7x:2x2x1
jax: 0.10.0
libtpu: 0.0.40
codegen_flags: <defaults>
</compile_context>

<pallas_src>
import jax
import jax.numpy as jnp
from jax.experimental import pallas as pl
from jax.experimental.pallas import tpu as pltpu

NEG_SLOPE = 0.01  # PyTorch nn.LeakyReLU default


def _round_up(x, m):
    return ((x + m - 1) // m) * m


def _leaky_relu(v):
    return jnp.where(v >= 0, v, NEG_SLOPE * v)


def mlp_kernel(x_ref,
               w1_ref, b1_ref,
               w2_ref, b2_ref,
               w3_ref, b3_ref,
               w4_ref, b4_ref,
               w5_ref, b5_ref,
               o_ref):
    cdt = w1_ref.dtype  # MXU input dtype (bf16 or f32); accumulation is f32.

    h = jnp.dot(x_ref[...], w1_ref[...],
                preferred_element_type=jnp.float32) + b1_ref[...]
    h = _leaky_relu(h)

    h = jnp.dot(h.astype(cdt), w2_ref[...],
                preferred_element_type=jnp.float32) + b2_ref[...]
    h = _leaky_relu(h)

    h = jnp.dot(h.astype(cdt), w3_ref[...],
                preferred_element_type=jnp.float32) + b3_ref[...]
    h = _leaky_relu(h)

    h = jnp.dot(h.astype(cdt), w4_ref[...],
                preferred_element_type=jnp.float32) + b4_ref[...]
    h = _leaky_relu(h)

    h = jnp.dot(h.astype(cdt), w5_ref[...],
                preferred_element_type=jnp.float32) + b5_ref[...]

    o_ref[...] = h.astype(o_ref.dtype)


def init_params(key, input_dim, output_dim, dtype=jnp.float32):
    """PyTorch-like uniform fan_in init.

    Weights are returned already transposed to (in_features, out_features).
    Biases are (1, out_features) for clean lane broadcasting.
    """
    dims = [input_dim, 64, 128, 128, 128, output_dim]
    params = []
    for i in range(5):
        fan_in, fan_out = dims[i], dims[i + 1]
        key, kw, kb = jax.random.split(key, 3)
        bound = 1.0 / (fan_in ** 0.5)
        w = jax.random.uniform(kw, (fan_in, fan_out), dtype, -bound, bound)
        b = jax.random.uniform(kb, (1, fan_out), dtype, -bound, bound)
        params.append((w, b))
    return params


def deep_network_forward(x, params, *, compute_dtype=jnp.bfloat16,
                         tile_m_max=1024):
    """x: (batch, input_dim) f32 -> (batch, output_dim) f32."""
    batch, in_dim = x.shape
    out_dim = params[-1][0].shape[1]

    # ---- lane-dense output: pad final layer to a multiple of 128 out lanes.
    out_pad = _round_up(out_dim, 128)
    w5, b5 = params[-1]
    if out_pad != out_dim:
        w5 = jnp.pad(w5, ((0, 0), (0, out_pad - out_dim)))
        b5 = jnp.pad(b5, ((0, 0), (0, out_pad - out_dim)))
    padded_params = list(params[:-1]) + [(w5, b5)]

    # ---- batch tiling (TM rows/tile, batch zero-padded to a tile multiple).
    tm = min(tile_m_max, _round_up(batch, 16))
    padded_batch = _round_up(batch, tm)
    if padded_batch != batch:
        x = jnp.pad(x, ((0, padded_batch - batch), (0, 0)))
    grid = (padded_batch // tm,)

    # ---- build flat args / specs: x tiled over the grid, params resident.
    flat_args = [x.astype(compute_dtype)]
    in_specs = [pl.BlockSpec((tm, in_dim), lambda i: (i, 0))]
    weight_bytes = 0
    for w, b in padded_params:
        wc = w.astype(compute_dtype)
        bc = b.astype(jnp.float32)  # bias add / LeakyReLU stay f32 (v5e VPU).
        flat_args.extend([wc, bc])
        in_specs.append(pl.BlockSpec(wc.shape, lambda i: (0, 0)))
        in_specs.append(pl.BlockSpec(bc.shape, lambda i: (0, 0)))
        weight_bytes += wc.size * wc.dtype.itemsize + bc.size * 4

    dims = [in_dim, 64, 128, 128, 128, out_pad]
    flops = 2 * padded_batch * sum(dims[i] * dims[i + 1] for i in range(5))
    bytes_accessed = (padded_batch * in_dim * jnp.dtype(compute_dtype).itemsize
                      + weight_bytes
                      + padded_batch * out_pad * 4)

    out = pl.pallas_call(
        mlp_kernel,
        out_shape=jax.ShapeDtypeStruct((padded_batch, out_pad), jnp.float32),
        grid=grid,
        in_specs=in_specs,
        out_specs=pl.BlockSpec((tm, out_pad), lambda i: (i, 0)),
        compiler_params=pltpu.CompilerParams(
            dimension_semantics=("parallel",)),
        cost_estimate=pl.CostEstimate(flops=flops, transcendentals=0,
                                      bytes_accessed=bytes_accessed),
    )(*flat_args)

    return out[:batch, :out_dim]


def deep_network_ref(x, params):
    """Pure-JAX f32 reference."""
    h = x
    for i, (w, b) in enumerate(params):
        h = h @ w + b
        if i < len(params) - 1:
            h = _leaky_relu(h)
    return h


if __name__ == "__main__":
    key = jax.random.PRNGKey(0)
    k_x, k_p, k_x2 = jax.random.split(key, 3)

    batch, input_dim, output_dim = 8, 32, 16
    x = jax.random.normal(k_x, (batch, input_dim), jnp.float32)
    params = init_params(k_p, input_dim, output_dim)
    ref = deep_network_ref(x, params)

    # 1) Throughput path: bf16 into the MXU, f32 accumulation.
    out_bf16 = jax.block_until_ready(
        deep_network_forward(x, params, compute_dtype=jnp.bfloat16))
    assert out_bf16.shape == (batch, output_dim), out_bf16.shape
    assert jnp.allclose(out_bf16, ref, atol=1e-1, rtol=1e-1), \
        f"bf16 max err {jnp.max(jnp.abs(out_bf16 - ref))}"

    # 2) Tight-tolerance f32 path.
    out_f32 = jax.block_until_ready(
        deep_network_forward(x, params, compute_dtype=jnp.float32))
    assert jnp.allclose(out_f32, ref, atol=1e-4, rtol=1e-4), \
        f"f32 max err {jnp.max(jnp.abs(out_f32 - ref))}"

    # 3) Multi-tile grid + uneven batch padding path (f32, small tiles).
    batch2 = 200
    x2 = jax.random.normal(k_x2, (batch2, input_dim), jnp.float32)
    out2 = jax.block_until_ready(
        deep_network_forward(x2, params, compute_dtype=jnp.float32,
                             tile_m_max=64))
    ref2 = deep_network_ref(x2, params)
    assert out2.shape == (batch2, output_dim), out2.shape
    assert jnp.allclose(out2, ref2, atol=1e-4, rtol=1e-4), \
        f"tiled max err {jnp.max(jnp.abs(out2 - ref2))}"

    print("KERNEL_OK")
</pallas_src>

<mosaic_0001>
module attributes {stable_mosaic.version = 11 : i64} {
  func.func @mlp_kernel(%arg0: i32, %arg1: memref<16x32xbf16, #tpu.memory_space<vmem>>, %arg2: memref<32x64xbf16, #tpu.memory_space<vmem>>, %arg3: memref<1x64xf32, #tpu.memory_space<vmem>>, %arg4: memref<64x128xbf16, #tpu.memory_space<vmem>>, %arg5: memref<1x128xf32, #tpu.memory_space<vmem>>, %arg6: memref<128x128xbf16, #tpu.memory_space<vmem>>, %arg7: memref<1x128xf32, #tpu.memory_space<vmem>>, %arg8: memref<128x128xbf16, #tpu.memory_space<vmem>>, %arg9: memref<1x128xf32, #tpu.memory_space<vmem>>, %arg10: memref<128x128xbf16, #tpu.memory_space<vmem>>, %arg11: memref<1x128xf32, #tpu.memory_space<vmem>>, %arg12: memref<16x128xf32, #tpu.memory_space<vmem>>) attributes {dimension_semantics = [#tpu.dimension_semantics<parallel>], iteration_bounds = array<i64: 1>, scalar_prefetch = 0 : i64, scratch_operands = 0 : i64, tpu.core_type = #tpu.core_type<tc>, window_params = [{transform_indices = @transform_0, window_bounds = array<i64: 16, 32>}, {pipeline_mode = #tpu.pipeline_mode<synchronous>, transform_indices = @transform_1, window_bounds = array<i64: 32, 64>}, {pipeline_mode = #tpu.pipeline_mode<synchronous>, transform_indices = @transform_2, window_bounds = array<i64: 1, 64>}, {pipeline_mode = #tpu.pipeline_mode<synchronous>, transform_indices = @transform_3, window_bounds = array<i64: 64, 128>}, {pipeline_mode = #tpu.pipeline_mode<synchronous>, transform_indices = @transform_4, window_bounds = array<i64: 1, 128>}, {pipeline_mode = #tpu.pipeline_mode<synchronous>, transform_indices = @transform_5, window_bounds = array<i64: 128, 128>}, {pipeline_mode = #tpu.pipeline_mode<synchronous>, transform_indices = @transform_6, window_bounds = array<i64: 1, 128>}, {pipeline_mode = #tpu.pipeline_mode<synchronous>, transform_indices = @transform_7, window_bounds = array<i64: 128, 128>}, {pipeline_mode = #tpu.pipeline_mode<synchronous>, transform_indices = @transform_8, window_bounds = array<i64: 1, 128>}, {pipeline_mode = #tpu.pipeline_mode<synchronous>, transform_indices = @transform_9, window_bounds = array<i64: 128, 128>}, {pipeline_mode = #tpu.pipeline_mode<synchronous>, transform_indices = @transform_10, window_bounds = array<i64: 1, 128>}, {transform_indices = @transform_11, window_bounds = array<i64: 16, 128>}]} {
    %c0 = arith.constant 0 : index
    %c0_0 = arith.constant 0 : index
    %0 = vector.load %arg1[%c0, %c0_0] : memref<16x32xbf16, #tpu.memory_space<vmem>>, vector<16x32xbf16>
    %c0_1 = arith.constant 0 : index
    %c0_2 = arith.constant 0 : index
    %1 = vector.load %arg2[%c0_1, %c0_2] : memref<32x64xbf16, #tpu.memory_space<vmem>>, vector<32x64xbf16>
    %cst = arith.constant dense<0.000000e+00> : vector<16x64xf32>
    %2 = tpu.matmul %0, %1, %cst {dimension_numbers = #tpu.dot_dimension_numbers<[1], [0], [0], [1], [0, 0, 1, 1], [], []>} : vector<16x32xbf16>, vector<32x64xbf16>, vector<16x64xf32> -> vector<16x64xf32>
    %c0_3 = arith.constant 0 : index
    %c0_4 = arith.constant 0 : index
    %3 = vector.load %arg3[%c0_3, %c0_4] : memref<1x64xf32, #tpu.memory_space<vmem>>, vector<1x64xf32>
    %4 = vector.broadcast %3 : vector<1x64xf32> to vector<16x64xf32>
    %5 = arith.addf %2, %4 : vector<16x64xf32>
    %cst_5 = arith.constant 0.000000e+00 : f32
    %6 = vector.broadcast %cst_5 : f32 to vector<16x64xf32>
    %7 = arith.cmpf oge, %5, %6 : vector<16x64xf32>
    %cst_6 = arith.constant 0.00999999977 : f32
    %8 = vector.broadcast %cst_6 : f32 to vector<16x64xf32>
    %9 = arith.mulf %8, %5 : vector<16x64xf32>
    %10 = arith.select %7, %5, %9 : vector<16x64xi1>, vector<16x64xf32>
    %11 = arith.truncf %10 : vector<16x64xf32> to vector<16x64xbf16>
    %c0_7 = arith.constant 0 : index
    %c0_8 = arith.constant 0 : index
    %12 = vector.load %arg4[%c0_7, %c0_8] : memref<64x128xbf16, #tpu.memory_space<vmem>>, vector<64x128xbf16>
    %cst_9 = arith.constant dense<0.000000e+00> : vector<16x128xf32>
    %13 = tpu.matmul %11, %12, %cst_9 {dimension_numbers = #tpu.dot_dimension_numbers<[1], [0], [0], [1], [0, 0, 1, 1], [], []>} : vector<16x64xbf16>, vector<64x128xbf16>, vector<16x128xf32> -> vector<16x128xf32>
    %c0_10 = arith.constant 0 : index
    %c0_11 = arith.constant 0 : index
    %14 = vector.load %arg5[%c0_10, %c0_11] : memref<1x128xf32, #tpu.memory_space<vmem>>, vector<1x128xf32>
    %15 = vector.broadcast %14 : vector<1x128xf32> to vector<16x128xf32>
    %16 = arith.addf %13, %15 : vector<16x128xf32>
    %cst_12 = arith.constant 0.000000e+00 : f32
    %17 = vector.broadcast %cst_12 : f32 to vector<16x128xf32>
    %18 = arith.cmpf oge, %16, %17 : vector<16x128xf32>
    %cst_13 = arith.constant 0.00999999977 : f32
    %19 = vector.broadcast %cst_13 : f32 to vector<16x128xf32>
    %20 = arith.mulf %19, %16 : vector<16x128xf32>
    %21 = arith.select %18, %16, %20 : vector<16x128xi1>, vector<16x128xf32>
    %22 = arith.truncf %21 : vector<16x128xf32> to vector<16x128xbf16>
    %c0_14 = arith.constant 0 : index
    %c0_15 = arith.constant 0 : index
    %23 = vector.load %arg6[%c0_14, %c0_15] : memref<128x128xbf16, #tpu.memory_space<vmem>>, vector<128x128xbf16>
    %cst_16 = arith.constant dense<0.000000e+00> : vector<16x128xf32>
    %24 = tpu.matmul %22, %23, %cst_16 {dimension_numbers = #tpu.dot_dimension_numbers<[1], [0], [0], [1], [0, 0, 1, 1], [], []>} : vector<16x128xbf16>, vector<128x128xbf16>, vector<16x128xf32> -> vector<16x128xf32>
    %c0_17 = arith.constant 0 : index
    %c0_18 = arith.constant 0 : index
    %25 = vector.load %arg7[%c0_17, %c0_18] : memref<1x128xf32, #tpu.memory_space<vmem>>, vector<1x128xf32>
    %26 = vector.broadcast %25 : vector<1x128xf32> to vector<16x128xf32>
    %27 = arith.addf %24, %26 : vector<16x128xf32>
    %cst_19 = arith.constant 0.000000e+00 : f32
    %28 = vector.broadcast %cst_19 : f32 to vector<16x128xf32>
    %29 = arith.cmpf oge, %27, %28 : vector<16x128xf32>
    %cst_20 = arith.constant 0.00999999977 : f32
    %30 = vector.broadcast %cst_20 : f32 to vector<16x128xf32>
    %31 = arith.mulf %30, %27 : vector<16x128xf32>
    %32 = arith.select %29, %27, %31 : vector<16x128xi1>, vector<16x128xf32>
    %33 = arith.truncf %32 : vector<16x128xf32> to vector<16x128xbf16>
    %c0_21 = arith.constant 0 : index
    %c0_22 = arith.constant 0 : index
    %34 = vector.load %arg8[%c0_21, %c0_22] : memref<128x128xbf16, #tpu.memory_space<vmem>>, vector<128x128xbf16>
    %cst_23 = arith.constant dense<0.000000e+00> : vector<16x128xf32>
    %35 = tpu.matmul %33, %34, %cst_23 {dimension_numbers = #tpu.dot_dimension_numbers<[1], [0], [0], [1], [0, 0, 1, 1], [], []>} : vector<16x128xbf16>, vector<128x128xbf16>, vector<16x128xf32> -> vector<16x128xf32>
    %c0_24 = arith.constant 0 : index
    %c0_25 = arith.constant 0 : index
    %36 = vector.load %arg9[%c0_24, %c0_25] : memref<1x128xf32, #tpu.memory_space<vmem>>, vector<1x128xf32>
    %37 = vector.broadcast %36 : vector<1x128xf32> to vector<16x128xf32>
    %38 = arith.addf %35, %37 : vector<16x128xf32>
    %cst_26 = arith.constant 0.000000e+00 : f32
    %39 = vector.broadcast %cst_26 : f32 to vector<16x128xf32>
    %40 = arith.cmpf oge, %38, %39 : vector<16x128xf32>
    %cst_27 = arith.constant 0.00999999977 : f32
    %41 = vector.broadcast %cst_27 : f32 to vector<16x128xf32>
    %42 = arith.mulf %41, %38 : vector<16x128xf32>
    %43 = arith.select %40, %38, %42 : vector<16x128xi1>, vector<16x128xf32>
    %44 = arith.truncf %43 : vector<16x128xf32> to vector<16x128xbf16>
    %c0_28 = arith.constant 0 : index
    %c0_29 = arith.constant 0 : index
    %45 = vector.load %arg10[%c0_28, %c0_29] : memref<128x128xbf16, #tpu.memory_space<vmem>>, vector<128x128xbf16>
    %cst_30 = arith.constant dense<0.000000e+00> : vector<16x128xf32>
    %46 = tpu.matmul %44, %45, %cst_30 {dimension_numbers = #tpu.dot_dimension_numbers<[1], [0], [0], [1], [0, 0, 1, 1], [], []>} : vector<16x128xbf16>, vector<128x128xbf16>, vector<16x128xf32> -> vector<16x128xf32>
    %c0_31 = arith.constant 0 : index
    %c0_32 = arith.constant 0 : index
    %47 = vector.load %arg11[%c0_31, %c0_32] : memref<1x128xf32, #tpu.memory_space<vmem>>, vector<1x128xf32>
    %48 = vector.broadcast %47 : vector<1x128xf32> to vector<16x128xf32>
    %49 = arith.addf %46, %48 : vector<16x128xf32>
    %c0_33 = arith.constant 0 : index
    %c0_34 = arith.constant 0 : index
    %50 = vector.load %arg12[%c0_33, %c0_34] : memref<16x128xf32, #tpu.memory_space<vmem>>, vector<16x128xf32>
    tpu.vector_store %arg12[%c0_33, %c0_34], %49 {strides = array<i32>} : memref<16x128xf32, #tpu.memory_space<vmem>>, vector<16x128xf32>,
    return
  }
  func.func @transform_0(%arg0: i32) -> (i32, i32) {
    %c0_i32 = arith.constant 0 : i32
    %c0_i32_0 = arith.constant 0 : i32
    return %arg0, %c0_i32 : i32, i32
  }
  func.func @transform_1(%arg0: i32) -> (i32, i32) {
    %c0_i32 = arith.constant 0 : i32
    %c0_i32_0 = arith.constant 0 : i32
    %c0_i32_1 = arith.constant 0 : i32
    return %c0_i32, %c0_i32_0 : i32, i32
  }
  func.func @transform_2(%arg0: i32) -> (i32, i32) {
    %c0_i32 = arith.constant 0 : i32
    %c0_i32_0 = arith.constant 0 : i32
    %c0_i32_1 = arith.constant 0 : i32
    return %c0_i32, %c0_i32_0 : i32, i32
  }
  func.func @transform_3(%arg0: i32) -> (i32, i32) {
    %c0_i32 = arith.constant 0 : i32
    %c0_i32_0 = arith.constant 0 : i32
    %c0_i32_1 = arith.constant 0 : i32
    return %c0_i32, %c0_i32_0 : i32, i32
  }
  func.func @transform_4(%arg0: i32) -> (i32, i32) {
    %c0_i32 = arith.constant 0 : i32
    %c0_i32_0 = arith.constant 0 : i32
    %c0_i32_1 = arith.constant 0 : i32
    return %c0_i32, %c0_i32_0 : i32, i32
  }
  func.func @transform_5(%arg0: i32) -> (i32, i32) {
    %c0_i32 = arith.constant 0 : i32
    %c0_i32_0 = arith.constant 0 : i32
    %c0_i32_1 = arith.constant 0 : i32
    return %c0_i32, %c0_i32_0 : i32, i32
  }
  func.func @transform_6(%arg0: i32) -> (i32, i32) {
    %c0_i32 = arith.constant 0 : i32
    %c0_i32_0 = arith.constant 0 : i32
    %c0_i32_1 = arith.constant 0 : i32
    return %c0_i32, %c0_i32_0 : i32, i32
  }
  func.func @transform_7(%arg0: i32) -> (i32, i32) {
    %c0_i32 = arith.constant 0 : i32
    %c0_i32_0 = arith.constant 0 : i32
    %c0_i32_1 = arith.constant 0 : i32
    return %c0_i32, %c0_i32_0 : i32, i32
  }
  func.func @transform_8(%arg0: i32) -> (i32, i32) {
    %c0_i32 = arith.constant 0 : i32
    %c0_i32_0 = arith.constant 0 : i32
    %c0_i32_1 = arith.constant 0 : i32
    return %c0_i32, %c0_i32_0 : i32, i32
  }
  func.func @transform_9(%arg0: i32) -> (i32, i32) {
    %c0_i32 = arith.constant 0 : i32
    %c0_i32_0 = arith.constant 0 : i32
    %c0_i32_1 = arith.constant 0 : i32
    return %c0_i32, %c0_i32_0 : i32, i32
  }
  func.func @transform_10(%arg0: i32) -> (i32, i32) {
    %c0_i32 = arith.constant 0 : i32
    %c0_i32_0 = arith.constant 0 : i32
    %c0_i32_1 = arith.constant 0 : i32
    return %c0_i32, %c0_i32_0 : i32, i32
  }
  func.func @transform_11(%arg0: i32) -> (i32, i32) {
    %c0_i32 = arith.constant 0 : i32
    %c0_i32_0 = arith.constant 0 : i32
    return %arg0, %c0_i32 : i32, i32
  }
}

</mosaic_0001>

<llo_original>
// kernel: tpu_custom_call.1
$region0: #{tpu_custom_call.1}
  #allocation0 [shape = 'u32[]', space=smem, size = 0x4, offset = 0x4, fixed_abs, tag = 'smem constant byte address 0x4 - core index']
  #allocation1 [shape = 'u32[144,128]{1,0:T(1,128)}', space=vmem, size = 0x12000, scoped, tag = 'internal scratch']
  %s0 = inlined_call_operand.hbm [shape: bf16[16,32], index: 0, kind: input, shape index: {}]
  %s1 = inlined_call_operand.hbm [shape: bf16[32,64], index: 1, kind: input, shape index: {}]
  %s2 = inlined_call_operand.vmem [shape: f32[1,64], index: 2, kind: input, shape index: {}]
  %s3 = inlined_call_operand.hbm [shape: bf16[64,128], index: 3, kind: input, shape index: {}]
  %s4 = inlined_call_operand.vmem [shape: f32[1,128], index: 4, kind: input, shape index: {}]
  %s5 = inlined_call_operand.hbm [shape: bf16[128,128], index: 5, kind: input, shape index: {}]
  %s6 = inlined_call_operand.vmem [shape: f32[1,128], index: 6, kind: input, shape index: {}]
  %s7 = inlined_call_operand.hbm [shape: bf16[128,128], index: 7, kind: input, shape index: {}]
  %s8 = inlined_call_operand.vmem [shape: f32[1,128], index: 8, kind: input, shape index: {}]
  %s9 = inlined_call_operand.hbm [shape: bf16[128,128], index: 9, kind: input, shape index: {}]
  %s10 = inlined_call_operand.vmem [shape: f32[1,128], index: 10, kind: input, shape index: {}]
  %s11 = inlined_call_operand.hbm [shape: f32[16,128], index: 11, kind: output, shape index: {}]
  %s12 = sld [smem:[#allocation0]]
  $region78: #{tpu_custom_call.1} parent=0
    _
  %s14 = ssub.s32 1, %s12
  %s15 = scalar_select 0, %s14, %s12
  $region1: #{tpu_custom_call.1} parent=0
    #allocation2 [shape = 'u8[4096]{0}', space=vmem, size = 0x1000, scoped, tag = 'input window, operand 0, single buffered']
    #allocation3 [shape = 's32[1]{0}', space=sflag, size = 0x4, scoped, tag = 'scoped memory for tpu_custom_call.1']
    #allocation4 [shape = 's32[1]{0}', space=sflag, size = 0x4, scoped, tag = 'scoped memory for tpu_custom_call.1']
    #allocation5 [shape = 'u8[8192]{0}', space=vmem, size = 0x2000, scoped, tag = 'input window, operand 1, single buffered']
    #allocation6 [shape = 's32[1]{0}', space=sflag, size = 0x4, scoped, tag = 'scoped memory for tpu_custom_call.1']
    #allocation7 [shape = 'u8[16384]{0}', space=vmem, size = 0x4000, scoped, tag = 'input window, operand 3, single buffered']
    #allocation8 [shape = 'u8[32768]{0}', space=vmem, size = 0x8000, scoped, tag = 'input window, operand 5, single buffered']
    #allocation9 [shape = 's32[1]{0}', space=sflag, size = 0x4, scoped, tag = 'scoped memory for tpu_custom_call.1']
    #allocation10 [shape = 'u8[32768]{0}', space=vmem, size = 0x8000, scoped, tag = 'input window, operand 7, single buffered']
    #allocation11 [shape = 'u8[32768]{0}', space=vmem, size = 0x8000, scoped, tag = 'input window, operand 9, single buffered']
    #allocation12 [shape = 's32[1]{0}', space=sflag, size = 0x4, scoped, tag = 'scoped memory for tpu_custom_call.1']
    #allocation13 [shape = 'u8[8192]{0}', space=vmem, size = 0x2000, scoped, tag = 'output window, operand 0, single buffered']
    %16 = vsyncpa [#allocation3], 0
    %17 = vsyncpa [#allocation6], 0
    %18 = vsyncpa [#allocation9], 0
    %19 = vsyncpa [#allocation12], 0
    %20 = vsyncpa [#allocation4], 0
    // Predicated region
    $region2: #{tpu_custom_call.1} parent=1 // pred_check
      _
    $region3: #{tpu_custom_call.1} parent=1 // pred_check_branch
      %22 = sbr.rel (0) target = $region5
    $region4: #{tpu_custom_call.1} parent=1 // pred_region
      %s24 = ssub.s32 128, 128
      %25 = vsyncadd [#allocation3], %s24
      %s26 = sshll.u32 [#allocation2], 4
      %s27 = int_to_ptr.vmem [resolvable:$true] %s26
      %32 = dma.hbm_to_vmem [thread:$0]  %s0, 128, %s27, [#allocation3], 64, 64, 4
    $region5: #{tpu_custom_call.1} parent=1 // pred_fallthru
      _
    // Predicated region
    $region6: #{tpu_custom_call.1} parent=1 // pred_check
      _
    $region7: #{tpu_custom_call.1} parent=1 // pred_check_branch
      %34 = sbr.rel (0) target = $region9
    $region8: #{tpu_custom_call.1} parent=1 // pred_region
      %s36 = ssub.s32 256, 256
      %37 = vsyncadd [#allocation6], %s36
      %s38 = sshll.u32 [#allocation5], 4
      %s39 = int_to_ptr.vmem [resolvable:$true] %s38
      %44 = dma.hbm_to_vmem [thread:$0]  %s1, 256, %s39, [#allocation6], 64, 64, 4
    $region9: #{tpu_custom_call.1} parent=1 // pred_fallthru
      _
    // Predicated region
    $region10: #{tpu_custom_call.1} parent=1 // pred_check
      _
    $region11: #{tpu_custom_call.1} parent=1 // pred_check_branch
      %46 = sbr.rel (0) target = $region13
    $region12: #{tpu_custom_call.1} parent=1 // pred_region
      _
    $region13: #{tpu_custom_call.1} parent=1 // pred_fallthru
      _
    // Predicated region
    $region14: #{tpu_custom_call.1} parent=1 // pred_check
      _
    $region15: #{tpu_custom_call.1} parent=1 // pred_check_branch
      %48 = sbr.rel (0) target = $region17
    $region16: #{tpu_custom_call.1} parent=1 // pred_region
      %s50 = ssub.s32 512, 512
      %51 = vsyncadd [#allocation6], %s50
      %s52 = sshll.u32 [#allocation7], 4
      %s53 = int_to_ptr.vmem [resolvable:$true] %s52
      %58 = dma.hbm_to_vmem [thread:$0]  %s3, 512, %s53, [#allocation6], 64, 64, 4
    $region17: #{tpu_custom_call.1} parent=1 // pred_fallthru
      _
    // Predicated region
    $region18: #{tpu_custom_call.1} parent=1 // pred_check
      _
    $region19: #{tpu_custom_call.1} parent=1 // pred_check_branch
      %60 = sbr.rel (0) target = $region21
    $region20: #{tpu_custom_call.1} parent=1 // pred_region
      _
    $region21: #{tpu_custom_call.1} parent=1 // pred_fallthru
      _
    // Predicated region
    $region22: #{tpu_custom_call.1} parent=1 // pred_check
      _
    $region23: #{tpu_custom_call.1} parent=1 // pred_check_branch
      %62 = sbr.rel (0) target = $region25
    $region24: #{tpu_custom_call.1} parent=1 // pred_region
      %s64 = ssub.s32 1024, 1024
      %65 = vsyncadd [#allocation9], %s64
      %s66 = sshll.u32 [#allocation8], 4
      %s67 = int_to_ptr.vmem [resolvable:$true] %s66
      %72 = dma.hbm_to_vmem [thread:$0]  %s5, 1024, %s67, [#allocation9], 64, 64, 4
    $region25: #{tpu_custom_call.1} parent=1 // pred_fallthru
      _
    // Predicated region
    $region26: #{tpu_custom_call.1} parent=1 // pred_check
      _
    $region27: #{tpu_custom_call.1} parent=1 // pred_check_branch
      %74 = sbr.rel (0) target = $region29
    $region28: #{tpu_custom_call.1} parent=1 // pred_region
      _
    $region29: #{tpu_custom_call.1} parent=1 // pred_fallthru
      _
    // Predicated region
    $region30: #{tpu_custom_call.1} parent=1 // pred_check
      _
    $region31: #{tpu_custom_call.1} parent=1 // pred_check_branch
      %76 = sbr.rel (0) target = $region33
    $region32: #{tpu_custom_call.1} parent=1 // pred_region
      %s78 = ssub.s32 1024, 1024
      %79 = vsyncadd [#allocation9], %s78
      %s80 = sshll.u32 [#allocation10], 4
      %s81 = int_to_ptr.vmem [resolvable:$true] %s80
      %86 = dma.hbm_to_vmem [thread:$0]  %s7, 1024, %s81, [#allocation9], 64, 64, 4
    $region33: #{tpu_custom_call.1} parent=1 // pred_fallthru
      _
    // Predicated region
    $region34: #{tpu_custom_call.1} parent=1 // pred_check
      _
    $region35: #{tpu_custom_call.1} parent=1 // pred_check_branch
      %88 = sbr.rel (0) target = $region37
    $region36: #{tpu_custom_call.1} parent=1 // pred_region
      _
    $region37: #{tpu_custom_call.1} parent=1 // pred_fallthru
      _
    // Predicated region
    $region38: #{tpu_custom_call.1} parent=1 // pred_check
      _
    $region39: #{tpu_custom_call.1} parent=1 // pred_check_branch
      %90 = sbr.rel (0) target = $region41
    $region40: #{tpu_custom_call.1} parent=1 // pred_region
      %s92 = ssub.s32 1024, 1024
      %93 = vsyncadd [#allocation12], %s92
      %s94 = sshll.u32 [#allocation11], 4
      %s95 = int_to_ptr.vmem [resolvable:$true] %s94
      %100 = dma.hbm_to_vmem [thread:$0]  %s9, 1024, %s95, [#allocation12], 64, 64, 4
    $region41: #{tpu_custom_call.1} parent=1 // pred_fallthru
      _
    // Predicated region
    $region42: #{tpu_custom_call.1} parent=1 // pred_check
      _
    $region43: #{tpu_custom_call.1} parent=1 // pred_check_branch
      %102 = sbr.rel (0) target = $region45
    $region44: #{tpu_custom_call.1} parent=1 // pred_region
      _
    $region45: #{tpu_custom_call.1} parent=1 // pred_fallthru
      _
    // Predicated region
    $region46: #{tpu_custom_call.1} parent=1 // pred_check
      _
    $region47: #{tpu_custom_call.1} parent=1 // pred_check_branch
      %104 = sbr.rel (0) target = $region49
    $region48: #{tpu_custom_call.1} parent=1 // pred_region
      %105 = dma.done [#allocation3], 128
    $region49: #{tpu_custom_call.1} parent=1 // pred_fallthru
      _
    // Predicated region
    $region50: #{tpu_custom_call.1} parent=1 // pred_check
      _
    $region51: #{tpu_custom_call.1} parent=1 // pred_check_branch
      %107 = sbr.rel (0) target = $region53
    $region52: #{tpu_custom_call.1} parent=1 // pred_region
      %108 = dma.done [#allocation6], 256
    $region53: #{tpu_custom_call.1} parent=1 // pred_fallthru
      _
    // Predicated region
    $region54: #{tpu_custom_call.1} parent=1 // pred_check
      _
    $region55: #{tpu_custom_call.1} parent=1 // pred_check_branch
      %110 = sbr.rel (0) target = $region57
    $region56: #{tpu_custom_call.1} parent=1 // pred_region
      %111 = dma.done [#allocation6], 512
    $region57: #{tpu_custom_call.1} parent=1 // pred_fallthru
      _
    // Predicated region
    $region58: #{tpu_custom_call.1} parent=1 // pred_check
      _
    $region59: #{tpu_custom_call.1} parent=1 // pred_check_branch
      %113 = sbr.rel (0) target = $region61
    $region60: #{tpu_custom_call.1} parent=1 // pred_region
      %114 = dma.done [#allocation9], 1024
    $region61: #{tpu_custom_call.1} parent=1 // pred_fallthru
      _
    // Predicated region
    $region62: #{tpu_custom_call.1} parent=1 // pred_check
      _
    $region63: #{tpu_custom_call.1} parent=1 // pred_check_branch
      %116 = sbr.rel (0) target = $region65
    $region64: #{tpu_custom_call.1} parent=1 // pred_region
      %117 = dma.done [#allocation9], 1024
    $region65: #{tpu_custom_call.1} parent=1 // pred_fallthru
      _
    // Predicated region
    $region66: #{tpu_custom_call.1} parent=1 // pred_check
      _
    $region67: #{tpu_custom_call.1} parent=1 // pred_check_branch
      %119 = sbr.rel (0) target = $region69
    $region68: #{tpu_custom_call.1} parent=1 // pred_region
      %120 = dma.done [#allocation12], 1024
    $region69: #{tpu_custom_call.1} parent=1 // pred_fallthru
      _
    %v122 = vld [vmem:[#allocation2] sm:$0xf]
    %v123 = vld [vmem:[#allocation2 + $0x4] sm:$0xf]
    %v124 = vld [vmem:[#allocation5] sm:$0xf]
    %v125 = vld [vmem:[#allocation5 + $0x4] sm:$0xf]
    %v126 = vld [vmem:[#allocation5 + $0x8] sm:$0xf]
    %v127 = vld [vmem:[#allocation5 + $0xc] sm:$0xf]
    %v128 = vld [vmem:[%s2] sm:$0x1]
    %v130 = vlaneseq
    %v131 = vshrl.u32 %v130, 7
    %v132 = vsub.s32 0, %v131
    %v133 = vrot.slane %v128, %v132
    %v137 = vunpack.c.l.b16 %v122
    %v138 = vunpack.c.l.b16 %v123
    %v139 = vpack.c.b16 %v138, %v137
    %v144 = vunpack.c.l.b16 %v124
    %v145 = vunpack.c.l.b16 %v125
    %v146 = vunpack.c.l.b16 %v126
    %v147 = vunpack.c.l.b16 %v127
    %v148 = vpack.c.b16 %v145, %v144
    %v149 = vpack.c.b16 %v147, %v146
    %vm152 = vcmask 261120
    %v154 = vsel %vm152, %v139, 0
    %156 = vmatprep.subr.bf16.mxu0 0
    %157 = vmatpush1.bf16.msra.mxu0 %v148
    %158 = vmatprep.subr.bf16.mxu0 0
    %159 = vmatpush1.bf16.msra.mxu0 %v149
    %160 = vmatprep.subr.bf16.mxu0 0
    %161 = vmatpush1.bf16.msra.mxu0 0
    %162 = vmatprep.subr.bf16.mxu0 0
    %163 = vmatpush1.bf16.msra.mxu0 0
    %164 = vmatprep.subr.bf16.mxu0 0
    %165 = vmatpush1.bf16.msra.mxu0 0
    %166 = vmatprep.subr.bf16.mxu0 0
    %167 = vmatpush1.bf16.msra.mxu0 0
    %168 = vmatprep.subr.bf16.mxu0 0
    %169 = vmatpush1.bf16.msra.mxu0 0
    %170 = vmatprep.subr.bf16.mxu0 0
    %171 = vmatpush1.bf16.msra.mxu0 0
    %172 = vmatprep.subr.bf16.mxu0 0
    %173 = vmatpush1.bf16.msra.mxu0 0
    %174 = vmatprep.subr.bf16.mxu0 0
    %175 = vmatpush1.bf16.msra.mxu0 0
    %176 = vmatprep.subr.bf16.mxu0 0
    %177 = vmatpush1.bf16.msra.mxu0 0
    %178 = vmatprep.subr.bf16.mxu0 0
    %179 = vmatpush1.bf16.msra.mxu0 0
    %180 = vmatprep.subr.bf16.mxu0 0
    %181 = vmatpush1.bf16.msra.mxu0 0
    %182 = vmatprep.subr.bf16.mxu0 0
    %183 = vmatpush1.bf16.msra.mxu0 0
    %184 = vmatprep.subr.bf16.mxu0 0
    %185 = vmatpush1.bf16.msra.mxu0 0
    %186 = vmatprep.subr.bf16.mxu0 0
    %187 = vmatpush1.bf16.msra.mxu0 0
    %188 = vmatprep.mubr.bf16.mxu0 0
    %189 = vmatmul.mubr.bf16.gmra.mrb[0].mxu0 %v154
    %v190 = vpop.f32.mrb[0].mxu0
    %v191 = vadd.f32 %v133, %v190
    %v192 = vpop.f32.mrb[0].mxu0
    %v193 = vpop.f32.mrb[0].mxu0
    %v194 = vadd.f32 %v133, %v193
    %v195 = vpop.f32.mrb[0].mxu0
    %196 = vdwg.mxu0
    %vm197 = vcmp.ge.f32.partialorder %v191, 0.0
    %vm198 = vcmp.ge.f32.partialorder %v194, 0.0
    %v199 = vmul.f32 %v191, 0.01
    %v200 = vmul.f32 %v194, 0.01
    %v201 = vsel %vm197, %v191, %v199
    %v202 = vsel %vm198, %v194, %v200
    %v203 = vpack.c.bf16 %v202, %v201
    %v204 = vld [vmem:[#allocation7] sm:$0xf]
    %v205 = vld [vmem:[#allocation7 + $0x4] sm:$0xf]
    %v206 = vld [vmem:[#allocation7 + $0x8] sm:$0xf]
    %v207 = vld [vmem:[#allocation7 + $0xc] sm:$0xf]
    %v208 = vld [vmem:[#allocation7 + $0x10] sm:$0xf]
    %v209 = vld [vmem:[#allocation7 + $0x14] sm:$0xf]
    %v210 = vld [vmem:[#allocation7 + $0x18] sm:$0xf]
    %v211 = vld [vmem:[#allocation7 + $0x1c] sm:$0xf]
    %v212 = vld [vmem:[%s4] sm:$0x1]
    %v214 = vlaneseq
    %v215 = vshrl.u32 %v214, 7
    %v216 = vsub.s32 0, %v215
    %v217 = vrot.slane %v212, %v216
    %v227 = vunpack.c.l.b16 %v204
    %v228 = vunpack.c.l.b16 %v205
    %v229 = vunpack.c.l.b16 %v206
    %v230 = vunpack.c.l.b16 %v207
    %v231 = vunpack.c.l.b16 %v208
    %v232 = vunpack.c.l.b16 %v209
    %v233 = vunpack.c.l.b16 %v210
    %v234 = vunpack.c.l.b16 %v211
    %v235 = vpack.c.b16 %v228, %v227
    %v236 = vpack.c.b16 %v230, %v229
    %v237 = vpack.c.b16 %v232, %v231
    %v238 = vpack.c.b16 %v234, %v233
    %vm243 = vcmask 523264
    %v245 = vsel %vm243, %v203, 0
    %247 = vmatprep.subr.bf16.mxu0 0
    %248 = vmatpush1.bf16.msra.mxu0 %v235
    %249 = vmatprep.subr.bf16.mxu0 0
    %250 = vmatpush1.bf16.msra.mxu0 %v236
    %251 = vmatprep.subr.bf16.mxu0 0
    %252 = vmatpush1.bf16.msra.mxu0 %v237
    %253 = vmatprep.subr.bf16.mxu0 0
    %254 = vmatpush1.bf16.msra.mxu0 %v238
    %255 = vmatprep.subr.bf16.mxu0 0
    %256 = vmatpush1.bf16.msra.mxu0 0
    %257 = vmatprep.subr.bf16.mxu0 0
    %258 = vmatpush1.bf16.msra.mxu0 0
    %259 = vmatprep.subr.bf16.mxu0 0
    %260 = vmatpush1.bf16.msra.mxu0 0
    %261 = vmatprep.subr.bf16.mxu0 0
    %262 = vmatpush1.bf16.msra.mxu0 0
    %263 = vmatprep.subr.bf16.mxu0 0
    %264 = vmatpush1.bf16.msra.mxu0 0
    %265 = vmatprep.subr.bf16.mxu0 0
    %266 = vmatpush1.bf16.msra.mxu0 0
    %267 = vmatprep.subr.bf16.mxu0 0
    %268 = vmatpush1.bf16.msra.mxu0 0
    %269 = vmatprep.subr.bf16.mxu0 0
    %270 = vmatpush1.bf16.msra.mxu0 0
    %271 = vmatprep.subr.bf16.mxu0 0
    %272 = vmatpush1.bf16.msra.mxu0 0
    %273 = vmatprep.subr.bf16.mxu0 0
    %274 = vmatpush1.bf16.msra.mxu0 0
    %275 = vmatprep.subr.bf16.mxu0 0
    %276 = vmatpush1.bf16.msra.mxu0 0
    %277 = vmatprep.subr.bf16.mxu0 0
    %278 = vmatpush1.bf16.msra.mxu0 0
    %279 = vmatprep.mubr.bf16.mxu0 0
    %280 = vmatmul.mubr.bf16.gmra.mrb[0].mxu0 %v245
    %v281 = vpop.f32.mrb[0].mxu0
    %v282 = vadd.f32 %v217, %v281
    %v283 = vpop.f32.mrb[0].mxu0
    %v284 = vpop.f32.mrb[0].mxu0
    %v285 = vadd.f32 %v217, %v284
    %v286 = vpop.f32.mrb[0].mxu0
    %287 = vdwg.mxu0
    %vm288 = vcmp.ge.f32.partialorder %v282, 0.0
    %vm289 = vcmp.ge.f32.partialorder %v285, 0.0
    %v290 = vmul.f32 %v282, 0.01
    %v291 = vmul.f32 %v285, 0.01
    %v292 = vsel %vm288, %v282, %v290
    %v293 = vsel %vm289, %v285, %v291
    %v294 = vpack.c.bf16 %v293, %v292
    %v295 = vld [vmem:[#allocation8] sm:$0xf]
    %v296 = vld [vmem:[#allocation8 + $0x4] sm:$0xf]
    %v297 = vld [vmem:[#allocation8 + $0x8] sm:$0xf]
    %v298 = vld [vmem:[#allocation8 + $0xc] sm:$0xf]
    %v299 = vld [vmem:[#allocation8 + $0x10] sm:$0xf]
    %v300 = vld [vmem:[#allocation8 + $0x14] sm:$0xf]
    %v301 = vld [vmem:[#allocation8 + $0x18] sm:$0xf]
    %v302 = vld [vmem:[#allocation8 + $0x1c] sm:$0xf]
    %v303 = vld [vmem:[#allocation8 + $0x20] sm:$0xf]
    %v304 = vld [vmem:[#allocation8 + $0x24] sm:$0xf]
    %v305 = vld [vmem:[#allocation8 + $0x28] sm:$0xf]
    %v306 = vld [vmem:[#allocation8 + $0x2c] sm:$0xf]
    %v307 = vld [vmem:[#allocation8 + $0x30] sm:$0xf]
    %v308 = vld [vmem:[#allocation8 + $0x34] sm:$0xf]
    %v309 = vld [vmem:[#allocation8 + $0x38] sm:$0xf]
    %v310 = vld [vmem:[#allocation8 + $0x3c] sm:$0xf]
    %v311 = vld [vmem:[%s6] sm:$0x1]
    %v313 = vlaneseq
    %v314 = vshrl.u32 %v313, 7
    %v315 = vsub.s32 0, %v314
    %v316 = vrot.slane %v311, %v315
    %v334 = vunpack.c.l.b16 %v295
    %v335 = vunpack.c.l.b16 %v296
    %v336 = vunpack.c.l.b16 %v297
    %v337 = vunpack.c.l.b16 %v298
    %v338 = vunpack.c.l.b16 %v299
    %v339 = vunpack.c.l.b16 %v300
    %v340 = vunpack.c.l.b16 %v301
    %v341 = vunpack.c.l.b16 %v302
    %v342 = vunpack.c.l.b16 %v303
    %v343 = vunpack.c.l.b16 %v304
    %v344 = vunpack.c.l.b16 %v305
    %v345 = vunpack.c.l.b16 %v306
    %v346 = vunpack.c.l.b16 %v307
    %v347 = vunpack.c.l.b16 %v308
    %v348 = vunpack.c.l.b16 %v309
    %v349 = vunpack.c.l.b16 %v310
    %v350 = vpack.c.b16 %v335, %v334
    %v351 = vpack.c.b16 %v337, %v336
    %v352 = vpack.c.b16 %v339, %v338
    %v353 = vpack.c.b16 %v341, %v340
    %v354 = vpack.c.b16 %v343, %v342
    %v355 = vpack.c.b16 %v345, %v344
    %v356 = vpack.c.b16 %v347, %v346
    %v357 = vpack.c.b16 %v349, %v348
    %366 = vmatprep.subr.bf16.mxu0 0
    %367 = vmatpush1.bf16.msra.mxu0 %v350
    %368 = vmatprep.subr.bf16.mxu0 0
    %369 = vmatpush1.bf16.msra.mxu0 %v351
    %370 = vmatprep.subr.bf16.mxu0 0
    %371 = vmatpush1.bf16.msra.mxu0 %v352
    %372 = vmatprep.subr.bf16.mxu0 0
    %373 = vmatpush1.bf16.msra.mxu0 %v353
    %374 = vmatprep.subr.bf16.mxu0 0
    %375 = vmatpush1.bf16.msra.mxu0 %v354
    %376 = vmatprep.subr.bf16.mxu0 0
    %377 = vmatpush1.bf16.msra.mxu0 %v355
    %378 = vmatprep.subr.bf16.mxu0 0
    %379 = vmatpush1.bf16.msra.mxu0 %v356
    %380 = vmatprep.subr.bf16.mxu0 0
    %381 = vmatpush1.bf16.msra.mxu0 %v357
    %382 = vmatprep.subr.bf16.mxu0 0
    %383 = vmatpush1.bf16.msra.mxu0 0
    %384 = vmatprep.subr.bf16.mxu0 0
    %385 = vmatpush1.bf16.msra.mxu0 0
    %386 = vmatprep.subr.bf16.mxu0 0
    %387 = vmatpush1.bf16.msra.mxu0 0
    %388 = vmatprep.subr.bf16.mxu0 0
    %389 = vmatpush1.bf16.msra.mxu0 0
    %390 = vmatprep.subr.bf16.mxu0 0
    %391 = vmatpush1.bf16.msra.mxu0 0
    %392 = vmatprep.subr.bf16.mxu0 0
    %393 = vmatpush1.bf16.msra.mxu0 0
    %394 = vmatprep.subr.bf16.mxu0 0
    %395 = vmatpush1.bf16.msra.mxu0 0
    %396 = vmatprep.subr.bf16.mxu0 0
    %397 = vmatpush1.bf16.msra.mxu0 0
    %398 = vmatprep.mubr.bf16.mxu0 0
    %399 = vmatmul.mubr.bf16.gmra.mrb[0].mxu0 %v294
    %v400 = vpop.f32.mrb[0].mxu0
    %v401 = vadd.f32 %v316, %v400
    %v402 = vpop.f32.mrb[0].mxu0
    %v403 = vpop.f32.mrb[0].mxu0
    %v404 = vadd.f32 %v316, %v403
    %v405 = vpop.f32.mrb[0].mxu0
    %406 = vdwg.mxu0
    %vm407 = vcmp.ge.f32.partialorder %v401, 0.0
    %vm408 = vcmp.ge.f32.partialorder %v404, 0.0
    %v409 = vmul.f32 %v401, 0.01
    %v410 = vmul.f32 %v404, 0.01
    %v411 = vsel %vm407, %v401, %v409
    %v412 = vsel %vm408, %v404, %v410
    %v413 = vpack.c.bf16 %v412, %v411
    %v414 = vld [vmem:[#allocation10] sm:$0xf]
    %v415 = vld [vmem:[#allocation10 + $0x4] sm:$0xf]
    %v416 = vld [vmem:[#allocation10 + $0x8] sm:$0xf]
    %v417 = vld [vmem:[#allocation10 + $0xc] sm:$0xf]
    %v418 = vld [vmem:[#allocation10 + $0x10] sm:$0xf]
    %v419 = vld [vmem:[#allocation10 + $0x14] sm:$0xf]
    %v420 = vld [vmem:[#allocation10 + $0x18] sm:$0xf]
    %v421 = vld [vmem:[#allocation10 + $0x1c] sm:$0xf]
    %v422 = vld [vmem:[#allocation10 + $0x20] sm:$0xf]
    %v423 = vld [vmem:[#allocation10 + $0x24] sm:$0xf]
    %v424 = vld [vmem:[#allocation10 + $0x28] sm:$0xf]
    %v425 = vld [vmem:[#allocation10 + $0x2c] sm:$0xf]
    %v426 = vld [vmem:[#allocation10 + $0x30] sm:$0xf]
    %v427 = vld [vmem:[#allocation10 + $0x34] sm:$0xf]
    %v428 = vld [vmem:[#allocation10 + $0x38] sm:$0xf]
    %v429 = vld [vmem:[#allocation10 + $0x3c] sm:$0xf]
    %v430 = vld [vmem:[%s8] sm:$0x1]
    %v432 = vlaneseq
    %v433 = vshrl.u32 %v432, 7
    %v434 = vsub.s32 0, %v433
    %v435 = vrot.slane %v430, %v434
    %v453 = vunpack.c.l.b16 %v414
    %v454 = vunpack.c.l.b16 %v415
    %v455 = vunpack.c.l.b16 %v416
    %v456 = vunpack.c.l.b16 %v417
    %v457 = vunpack.c.l.b16 %v418
    %v458 = vunpack.c.l.b16 %v419
    %v459 = vunpack.c.l.b16 %v420
    %v460 = vunpack.c.l.b16 %v421
    %v461 = vunpack.c.l.b16 %v422
    %v462 = vunpack.c.l.b16 %v423
    %v463 = vunpack.c.l.b16 %v424
    %v464 = vunpack.c.l.b16 %v425
    %v465 = vunpack.c.l.b16 %v426
    %v466 = vunpack.c.l.b16 %v427
    %v467 = vunpack.c.l.b16 %v428
    %v468 = vunpack.c.l.b16 %v429
    %v469 = vpack.c.b16 %v454, %v453
    %v470 = vpack.c.b16 %v456, %v455
    %v471 = vpack.c.b16 %v458, %v457
    %v472 = vpack.c.b16 %v460, %v459
    %v473 = vpack.c.b16 %v462, %v461
    %v474 = vpack.c.b16 %v464, %v463
    %v475 = vpack.c.b16 %v466, %v465
    %v476 = vpack.c.b16 %v468, %v467
    %485 = vmatprep.subr.bf16.mxu0 0
    %486 = vmatpush1.bf16.msra.mxu0 %v469
    %487 = vmatprep.subr.bf16.mxu0 0
    %488 = vmatpush1.bf16.msra.mxu0 %v470
    %489 = vmatprep.subr.bf16.mxu0 0
    %490 = vmatpush1.bf16.msra.mxu0 %v471
    %491 = vmatprep.subr.bf16.mxu0 0
    %492 = vmatpush1.bf16.msra.mxu0 %v472
    %493 = vmatprep.subr.bf16.mxu0 0
    %494 = vmatpush1.bf16.msra.mxu0 %v473
    %495 = vmatprep.subr.bf16.mxu0 0
    %496 = vmatpush1.bf16.msra.mxu0 %v474
    %497 = vmatprep.subr.bf16.mxu0 0
    %498 = vmatpush1.bf16.msra.mxu0 %v475
    %499 = vmatprep.subr.bf16.mxu0 0
    %500 = vmatpush1.bf16.msra.mxu0 %v476
    %501 = vmatprep.subr.bf16.mxu0 0
    %502 = vmatpush1.bf16.msra.mxu0 0
    %503 = vmatprep.subr.bf16.mxu0 0
    %504 = vmatpush1.bf16.msra.mxu0 0
    %505 = vmatprep.subr.bf16.mxu0 0
    %506 = vmatpush1.bf16.msra.mxu0 0
    %507 = vmatprep.subr.bf16.mxu0 0
    %508 = vmatpush1.bf16.msra.mxu0 0
    %509 = vmatprep.subr.bf16.mxu0 0
    %510 = vmatpush1.bf16.msra.mxu0 0
    %511 = vmatprep.subr.bf16.mxu0 0
    %512 = vmatpush1.bf16.msra.mxu0 0
    %513 = vmatprep.subr.bf16.mxu0 0
    %514 = vmatpush1.bf16.msra.mxu0 0
    %515 = vmatprep.subr.bf16.mxu0 0
    %516 = vmatpush1.bf16.msra.mxu0 0
    %517 = vmatprep.mubr.bf16.mxu0 0
    %518 = vmatmul.mubr.bf16.gmra.mrb[0].mxu0 %v413
    %v519 = vpop.f32.mrb[0].mxu0
    %v520 = vadd.f32 %v435, %v519
    %v521 = vpop.f32.mrb[0].mxu0
    %v522 = vpop.f32.mrb[0].mxu0
    %v523 = vadd.f32 %v435, %v522
    %v524 = vpop.f32.mrb[0].mxu0
    %525 = vdwg.mxu0
    %vm526 = vcmp.ge.f32.partialorder %v520, 0.0
    %vm527 = vcmp.ge.f32.partialorder %v523, 0.0
    %v528 = vmul.f32 %v520, 0.01
    %v529 = vmul.f32 %v523, 0.01
    %v530 = vsel %vm526, %v520, %v528
    %v531 = vsel %vm527, %v523, %v529
    %v532 = vpack.c.bf16 %v531, %v530
    %v533 = vld [vmem:[#allocation11] sm:$0xf]
    %v534 = vld [vmem:[#allocation11 + $0x4] sm:$0xf]
    %v535 = vld [vmem:[#allocation11 + $0x8] sm:$0xf]
    %v536 = vld [vmem:[#allocation11 + $0xc] sm:$0xf]
    %v537 = vld [vmem:[#allocation11 + $0x10] sm:$0xf]
    %v538 = vld [vmem:[#allocation11 + $0x14] sm:$0xf]
    %v539 = vld [vmem:[#allocation11 + $0x18] sm:$0xf]
    %v540 = vld [vmem:[#allocation11 + $0x1c] sm:$0xf]
    %v541 = vld [vmem:[#allocation11 + $0x20] sm:$0xf]
    %v542 = vld [vmem:[#allocation11 + $0x24] sm:$0xf]
    %v543 = vld [vmem:[#allocation11 + $0x28] sm:$0xf]
    %v544 = vld [vmem:[#allocation11 + $0x2c] sm:$0xf]
    %v545 = vld [vmem:[#allocation11 + $0x30] sm:$0xf]
    %v546 = vld [vmem:[#allocation11 + $0x34] sm:$0xf]
    %v547 = vld [vmem:[#allocation11 + $0x38] sm:$0xf]
    %v548 = vld [vmem:[#allocation11 + $0x3c] sm:$0xf]
    %v549 = vld [vmem:[%s10] sm:$0x1]
    %v551 = vlaneseq
    %v552 = vshrl.u32 %v551, 7
    %v553 = vsub.s32 0, %v552
    %v554 = vrot.slane %v549, %v553
    %v572 = vunpack.c.l.b16 %v533
    %v573 = vunpack.c.l.b16 %v534
    %v574 = vunpack.c.l.b16 %v535
    %v575 = vunpack.c.l.b16 %v536
    %v576 = vunpack.c.l.b16 %v537
    %v577 = vunpack.c.l.b16 %v538
    %v578 = vunpack.c.l.b16 %v539
    %v579 = vunpack.c.l.b16 %v540
    %v580 = vunpack.c.l.b16 %v541
    %v581 = vunpack.c.l.b16 %v542
    %v582 = vunpack.c.l.b16 %v543
    %v583 = vunpack.c.l.b16 %v544
    %v584 = vunpack.c.l.b16 %v545
    %v585 = vunpack.c.l.b16 %v546
    %v586 = vunpack.c.l.b16 %v547
    %v587 = vunpack.c.l.b16 %v548
    %v588 = vpack.c.b16 %v573, %v572
    %v589 = vpack.c.b16 %v575, %v574
    %v590 = vpack.c.b16 %v577, %v576
    %v591 = vpack.c.b16 %v579, %v578
    %v592 = vpack.c.b16 %v581, %v580
    %v593 = vpack.c.b16 %v583, %v582
    %v594 = vpack.c.b16 %v585, %v584
    %v595 = vpack.c.b16 %v587, %v586
    %604 = vmatprep.subr.bf16.mxu0 0
    %605 = vmatpush1.bf16.msra.mxu0 %v588
    %606 = vmatprep.subr.bf16.mxu0 0
    %607 = vmatpush1.bf16.msra.mxu0 %v589
    %608 = vmatprep.subr.bf16.mxu0 0
    %609 = vmatpush1.bf16.msra.mxu0 %v590
    %610 = vmatprep.subr.bf16.mxu0 0
    %611 = vmatpush1.bf16.msra.mxu0 %v591
    %612 = vmatprep.subr.bf16.mxu0 0
    %613 = vmatpush1.bf16.msra.mxu0 %v592
    %614 = vmatprep.subr.bf16.mxu0 0
    %615 = vmatpush1.bf16.msra.mxu0 %v593
    %616 = vmatprep.subr.bf16.mxu0 0
    %617 = vmatpush1.bf16.msra.mxu0 %v594
    %618 = vmatprep.subr.bf16.mxu0 0
    %619 = vmatpush1.bf16.msra.mxu0 %v595
    %620 = vmatprep.subr.bf16.mxu0 0
    %621 = vmatpush1.bf16.msra.mxu0 0
    %622 = vmatprep.subr.bf16.mxu0 0
    %623 = vmatpush1.bf16.msra.mxu0 0
    %624 = vmatprep.subr.bf16.mxu0 0
    %625 = vmatpush1.bf16.msra.mxu0 0
    %626 = vmatprep.subr.bf16.mxu0 0
    %627 = vmatpush1.bf16.msra.mxu0 0
    %628 = vmatprep.subr.bf16.mxu0 0
    %629 = vmatpush1.bf16.msra.mxu0 0
    %630 = vmatprep.subr.bf16.mxu0 0
    %631 = vmatpush1.bf16.msra.mxu0 0
    %632 = vmatprep.subr.bf16.mxu0 0
    %633 = vmatpush1.bf16.msra.mxu0 0
    %634 = vmatprep.subr.bf16.mxu0 0
    %635 = vmatpush1.bf16.msra.mxu0 0
    %636 = vmatprep.mubr.bf16.mxu0 0
    %637 = vmatmul.mubr.bf16.gmra.mrb[0].mxu0 %v532
    %v638 = vpop.f32.mrb[0].mxu0
    %v639 = vadd.f32 %v554, %v638
    %v640 = vpop.f32.mrb[0].mxu0
    %v641 = vpop.f32.mrb[0].mxu0
    %v642 = vadd.f32 %v554, %v641
    %v643 = vpop.f32.mrb[0].mxu0
    %644 = vdwg.mxu0
    %645 = vst [vmem:[#allocation13] sm:$0xff] %v639
    %646 = vst [vmem:[#allocation13 + $0x8] sm:$0xff] %v642
    // Predicated region
    $region70: #{tpu_custom_call.1} parent=1 // pred_check
      _
    $region71: #{tpu_custom_call.1} parent=1 // pred_check_branch
      %648 = sbr.rel (0) target = $region73
    $region72: #{tpu_custom_call.1} parent=1 // pred_region
      %s650 = ssub.s32 256, 256
      %651 = vsyncadd [#allocation4], %s650
      %s652 = sshll.u32 [#allocation13], 4
      %s653 = int_to_ptr.vmem [resolvable:$true] %s652
      %658 = dma.vmem_to_hbm [thread:$0]  %s653, 256, %s11, [#allocation4], 128, 128, 8
    $region73: #{tpu_custom_call.1} parent=1 // pred_fallthru
      _
    // Predicated region
    $region74: #{tpu_custom_call.1} parent=1 // pred_check
      _
    $region75: #{tpu_custom_call.1} parent=1 // pred_check_branch
      %660 = sbr.rel (0) target = $region77
    $region76: #{tpu_custom_call.1} parent=1 // pred_region
      %661 = dma.done [#allocation4], 256
    $region77: #{tpu_custom_call.1} parent=1 // pred_fallthru
      _
    %662 = vsyncpa [#allocation3], 1
    %663 = vsyncpa [#allocation6], 1
    %664 = vsyncpa [#allocation9], 1
    %665 = vsyncpa [#allocation12], 1
    %666 = vsyncpa [#allocation4], 1

</llo_original>
